<compile_context>
chip_gen: v7x
topology: tpu7x:2x2x1
jax: 0.10.0
libtpu: 0.0.40
codegen_flags: <defaults>
</compile_context>

<pallas_src>
import functools
import math

import jax
import jax.numpy as jnp
from jax.experimental import pallas as pl
from jax.experimental.pallas import tpu as pltpu


# ---------------------------------------------------------------------------
# Parameter / buffer setup (plain JAX glue, mirrors PositionalEncoding.__init__)
# ---------------------------------------------------------------------------
def make_positional_encoding(d_model: int, max_len: int = 5000,
                             dtype=jnp.float32) -> jax.Array:
    """Build the (max_len, d_model) sinusoidal positional-encoding buffer.

    Built in f32 for accuracy, stored in `dtype` (the model dtype) so the
    forward wrapper never has to re-cast it per call.
    """
    position = jnp.arange(0, max_len, dtype=jnp.float32)[:, None]           # (max_len, 1)
    div_term = jnp.exp(
        jnp.arange(0, d_model, 2, dtype=jnp.float32) * -(math.log(10000.0) / d_model)
    )                                                                        # (d_model//2,)
    pe = jnp.zeros((max_len, d_model), dtype=jnp.float32)
    pe = pe.at[:, 0::2].set(jnp.sin(position * div_term))
    pe = pe.at[:, 1::2].set(jnp.cos(position * div_term))
    return pe.astype(dtype)


# ---------------------------------------------------------------------------
# Tiling plan
# ---------------------------------------------------------------------------
def _plan_seq_tiling(seq_len, batch, d_model, itemsize, seq_tile=None,
                     target_block_bytes=8 << 20):
    """Pick a seq-axis tile.

    The tile is a multiple of the sublane packing (8 f32 / 16 bf16 / 32 8-bit)
    so the (seq_tile, d_model) pe block and the (seq_tile*batch, d_model) x
    block are layout-legal, and is sized so one x-block is about
    `target_block_bytes` (~8 MiB: per-step overhead <10% of DMA time even at
    v7x HBM bandwidth, and the double-buffered pipeline stays well inside the
    48 MiB VMEM cap below).

    Returns (seq_tile, slice_pe): if `slice_pe` is True (tiny / odd sequences)
    the caller must pass pe[:seq_len] so the single full-extent block matches
    pe's dims exactly.
    """
    sub = max(8, 32 // max(1, itemsize))          # f32: 8, bf16: 16, int8/fp8: 32
    if seq_tile is None:
        row_bytes = max(1, batch * d_model * itemsize)
        seq_tile = max(sub, (target_block_bytes // row_bytes) // sub * sub)
    seq_tile = min(int(seq_tile), seq_len)
    slice_pe = (seq_tile % sub) != 0              # only for seq_len < sub (or odd override)
    if slice_pe:
        seq_tile = seq_len                        # single full-extent tile
    return seq_tile, slice_pe


def _vmem_limit_bytes(rows_tile, seq_tile, d_model, itemsize, mask_itemsize=0):
    x_blk = rows_tile * d_model * itemsize
    pe_blk = seq_tile * d_model * itemsize
    mask_blk = rows_tile * d_model * mask_itemsize
    est = 2 * (2 * x_blk + pe_blk + mask_blk)     # double-buffered x, out, pe(, mask)
    # Floor at 32 MiB; cap at 48 MiB so we always leave headroom on v7x
    # (64 MiB physical per TensorCore) and an oversized user tile fails loudly.
    return int(min(max(est + (4 << 20), 32 << 20), 48 << 20))


# ---------------------------------------------------------------------------
# Pallas kernels
# ---------------------------------------------------------------------------
def _pe_add_kernel(x_ref, pe_ref, o_ref, *, seq_tile, batch):
    # x_ref/o_ref: (seq_tile*batch, d_model); pe_ref: (seq_tile, d_model).
    # The leading-axis reshape is layout-preserving (last dim unchanged); the
    # [:, None, :] broadcast runs along the sublane (batch) axis of the block.
    d = x_ref.shape[-1]
    x3 = x_ref[...].reshape(seq_tile, batch, d)
    y = x3 + pe_ref[...][:, None, :]
    o_ref[...] = y.reshape(o_ref.shape)


def _pe_add_dropout_kernel(x_ref, pe_ref, mask_ref, o_ref, *, seq_tile, batch,
                           keep_prob: float):
    # Training-mode inverted dropout.  mask holds {0, 1} in the x dtype; the
    # scale-by-1/keep_prob is free VPU work under the DMA (kernel is HBM-bound).
    d = x_ref.shape[-1]
    x3 = x_ref[...].reshape(seq_tile, batch, d)
    y = (x3 + pe_ref[...][:, None, :]).reshape(o_ref.shape)
    o_ref[...] = (y * mask_ref[...] * (1.0 / keep_prob)).astype(o_ref.dtype)


# ---------------------------------------------------------------------------
# Wrappers
# ---------------------------------------------------------------------------
def _prep(x, pe, seq_tile):
    seq_len, batch, d_model = x.shape
    assert pe.ndim == 2 and pe.shape[1] == d_model and pe.shape[0] >= seq_len
    ts, slice_pe = _plan_seq_tiling(seq_len, batch, d_model, x.dtype.itemsize, seq_tile)
    if pe.dtype != x.dtype:
        # Fallback only -- build pe in the model dtype at init to avoid this copy.
        pe = pe.astype(x.dtype)
    # Slice pe only when needed: tiny/odd tile, or the padded last tile window
    # would extend past max_len (then pe must share x's partial-block clamping).
    padded = pl.cdiv(seq_len, ts) * ts
    pe_in = pe[:seq_len] if (slice_pe or padded > pe.shape[0]) else pe
    x2d = x.reshape(seq_len * batch, d_model)     # free, contiguous view
    rows_tile = ts * batch
    grid = (pl.cdiv(seq_len, ts),)
    return seq_len, batch, d_model, ts, rows_tile, grid, x2d, pe_in


def positional_encoding_forward(x: jax.Array, pe: jax.Array, *, seq_tile=None) -> jax.Array:
    """Eval-mode forward: x + pe[:seq_len] (dropout == identity)."""
    seq_len, batch, d_model, ts, rows_tile, grid, x2d, pe_in = _prep(x, pe, seq_tile)
    kernel = functools.partial(_pe_add_kernel, seq_tile=ts, batch=batch)
    out2d = pl.pallas_call(
        kernel,
        out_shape=jax.ShapeDtypeStruct((seq_len * batch, d_model), x.dtype),
        grid_spec=pltpu.PrefetchScalarGridSpec(
            num_scalar_prefetch=0,
            grid=grid,
            in_specs=[
                pl.BlockSpec((rows_tile, d_model), lambda s: (s, 0)),
                pl.BlockSpec((ts, d_model), lambda s: (s, 0)),   # pe rows picked here
            ],
            out_specs=pl.BlockSpec((rows_tile, d_model), lambda s: (s, 0)),
        ),
        compiler_params=pltpu.CompilerParams(
            dimension_semantics=("parallel",),
            vmem_limit_bytes=_vmem_limit_bytes(rows_tile, ts, d_model, x.dtype.itemsize),
        ),
        input_output_aliases={0: 0},                              # out aliases x (x += pe)
    )(x2d, pe_in)
    return out2d.reshape(seq_len, batch, d_model)


def positional_encoding_forward_train(
    x: jax.Array, pe: jax.Array, key: jax.Array, dropout_p: float = 0.1, *, seq_tile=None
) -> jax.Array:
    """Training-mode forward: (x + pe[:seq_len]) with inverted dropout.

    The keep-mask is drawn with jax.random in the wrapper (see TODO at top) and
    streamed through the kernel alongside x; distributionally equivalent to
    torch.nn.Dropout but not bit-identical to torch's RNG.
    """
    assert 0.0 <= dropout_p < 1.0
    if dropout_p == 0.0:
        return positional_encoding_forward(x, pe, seq_tile=seq_tile)
    seq_len, batch, d_model, ts, rows_tile, grid, x2d, pe_in = _prep(x, pe, seq_tile)
    keep_prob = 1.0 - float(dropout_p)
    mask = jax.random.bernoulli(key, keep_prob, (seq_len * batch, d_model)).astype(x.dtype)
    kernel = functools.partial(_pe_add_dropout_kernel, seq_tile=ts, batch=batch,
                               keep_prob=keep_prob)
    out2d = pl.pallas_call(
        kernel,
        out_shape=jax.ShapeDtypeStruct((seq_len * batch, d_model), x.dtype),
        grid_spec=pltpu.PrefetchScalarGridSpec(
            num_scalar_prefetch=0,
            grid=grid,
            in_specs=[
                pl.BlockSpec((rows_tile, d_model), lambda s: (s, 0)),
                pl.BlockSpec((ts, d_model), lambda s: (s, 0)),
                pl.BlockSpec((rows_tile, d_model), lambda s: (s, 0)),
            ],
            out_specs=pl.BlockSpec((rows_tile, d_model), lambda s: (s, 0)),
        ),
        compiler_params=pltpu.CompilerParams(
            dimension_semantics=("parallel",),
            vmem_limit_bytes=_vmem_limit_bytes(rows_tile, ts, d_model, x.dtype.itemsize,
                                               mask_itemsize=x.dtype.itemsize),
        ),
        input_output_aliases={0: 0},                              # out aliases x
    )(x2d, pe_in, mask)
    return out2d.reshape(seq_len, batch, d_model)


# ---------------------------------------------------------------------------
# Main
# ---------------------------------------------------------------------------
if __name__ == "__main__":
    # batch multiple of 8 (sublane-dense), d_model multiple of 128 (lane-dense).
    seq_len, batch, d_model = 128, 8, 128
    max_len = 256  # small max_len for the synthetic test (module default is 5000)

    key = jax.random.PRNGKey(0)
    x = jax.random.normal(key, (seq_len, batch, d_model), dtype=jnp.float32)
    pe = make_positional_encoding(d_model, max_len, dtype=x.dtype)

    # Reference semantics of the PyTorch forward (eval mode).
    ref = x + pe[:seq_len][:, None, :]

    # Eval-mode forward; seq_tile=32 -> grid=(4,) so the demo exercises pipelining.
    out = positional_encoding_forward(x, pe, seq_tile=32)
    out = jax.block_until_ready(out)
    assert out.shape == (seq_len, batch, d_model)
    assert jnp.allclose(out, ref, atol=1e-6, rtol=1e-6)

    # Also exercise the auto-planned tile (single big block here).
    out_auto = jax.block_until_ready(positional_encoding_forward(x, pe))
    assert jnp.allclose(out_auto, ref, atol=1e-6, rtol=1e-6)

    # Training-mode forward (inverted dropout; mask drawn with jax.random).
    p = 0.1
    keep_prob = 1.0 - p
    out_tr = positional_encoding_forward_train(
        x, pe, jax.random.PRNGKey(1234), dropout_p=p, seq_tile=32)
    out_tr = jax.block_until_ready(out_tr)
    assert out_tr.shape == (seq_len, batch, d_model)
    scaled = ref / keep_prob
    dropped = out_tr == 0.0
    assert bool(jnp.all(dropped | jnp.isclose(out_tr, scaled, atol=1e-5, rtol=1e-5)))
    keep_frac = 1.0 - float(jnp.mean(dropped.astype(jnp.float32)))
    assert 0.5 < keep_frac < 0.999  # loose sanity band around keep_prob=0.9

    print("KERNEL_OK")
</pallas_src>

<mosaic_0001>
module attributes {stable_mosaic.version = 11 : i64} {
  func.func @_pe_add_kernel(%arg0: i32, %arg1: memref<256x128xf32, #tpu.memory_space<vmem>>, %arg2: memref<32x128xf32, #tpu.memory_space<vmem>>, %arg3: memref<256x128xf32, #tpu.memory_space<vmem>>) attributes {dimension_semantics = [#tpu.dimension_semantics<parallel>], iteration_bounds = array<i64: 4>, scalar_prefetch = 0 : i64, scratch_operands = 0 : i64, tpu.core_type = #tpu.core_type<tc>, window_params = [{transform_indices = @transform_0, window_bounds = array<i64: 256, 128>}, {transform_indices = @transform_1, window_bounds = array<i64: 32, 128>}, {transform_indices = @transform_2, window_bounds = array<i64: 256, 128>}]} {
    %c0 = arith.constant 0 : index
    %c0_0 = arith.constant 0 : index
    %0 = vector.load %arg1[%c0, %c0_0] : memref<256x128xf32, #tpu.memory_space<vmem>>, vector<256x128xf32>
    %1 = vector.shape_cast %0 : vector<256x128xf32> to vector<32x8x128xf32>
    %c0_1 = arith.constant 0 : index
    %c0_2 = arith.constant 0 : index
    %2 = vector.load %arg2[%c0_1, %c0_2] : memref<32x128xf32, #tpu.memory_space<vmem>>, vector<32x128xf32>
    %3 = vector.shape_cast %2 : vector<32x128xf32> to vector<32x1x128xf32>
    %4 = vector.broadcast %3 : vector<32x1x128xf32> to vector<32x8x128xf32>
    %5 = arith.addf %1, %4 : vector<32x8x128xf32>
    %6 = vector.shape_cast %5 : vector<32x8x128xf32> to vector<256x128xf32>
    %c0_3 = arith.constant 0 : index
    %c0_4 = arith.constant 0 : index
    %7 = vector.load %arg3[%c0_3, %c0_4] : memref<256x128xf32, #tpu.memory_space<vmem>>, vector<256x128xf32>
    tpu.vector_store %arg3[%c0_3, %c0_4], %6 {strides = array<i32>} : memref<256x128xf32, #tpu.memory_space<vmem>>, vector<256x128xf32>,
    return
  }
  func.func @transform_0(%arg0: i32) -> (i32, i32) {
    %c0_i32 = arith.constant 0 : i32
    %c0_i32_0 = arith.constant 0 : i32
    return %arg0, %c0_i32 : i32, i32
  }
  func.func @transform_1(%arg0: i32) -> (i32, i32) {
    %c0_i32 = arith.constant 0 : i32
    %c0_i32_0 = arith.constant 0 : i32
    return %arg0, %c0_i32 : i32, i32
  }
  func.func @transform_2(%arg0: i32) -> (i32, i32) {
    %c0_i32 = arith.constant 0 : i32
    %c0_i32_0 = arith.constant 0 : i32
    return %arg0, %c0_i32 : i32, i32
  }
}

</mosaic_0001>

<llo_original>
// kernel: tpu_custom_call.1
$region0: #{tpu_custom_call.1}
  #allocation0 [shape = 'u32[]', space=smem, size = 0x4, offset = 0x4, fixed_abs, tag = 'smem constant byte address 0x4 - core index']
  #allocation1 [shape = 'u32[144,128]{1,0:T(1,128)}', space=vmem, size = 0x12000, scoped, tag = 'internal scratch']
  %s0 = inlined_call_operand.hbm [shape: f32[1024,128], index: 0, kind: input, shape index: {}, may-alias: {0,2}]
  %s1 = inlined_call_operand.vmem [shape: f32[256,128], index: 1, kind: input, shape index: {}]
  %s2 = inlined_call_operand.hbm [shape: f32[1024,128], index: 2, kind: output, shape index: {}, may-alias: {0,2}]
  %s3 = sld [smem:[#allocation0]]
  $region45: #{tpu_custom_call.1} parent=0
    _
  %s5 = ssub.s32 1, %s3
  %s6 = scalar_select 0, %s5, %s3
  $region1: #{tpu_custom_call.1} parent=0
    #allocation2 [shape = 'u8[262144]{0}', space=vmem, size = 0x40000, scoped, tag = 'input window, operand 0']
    #allocation3 [shape = 's32[2]{0}', space=sflag, size = 0x8, scoped, tag = 'scoped memory for tpu_custom_call.1']
    #allocation4 [shape = 's32[2]{0}', space=sflag, size = 0x8, scoped, tag = 'scoped memory for tpu_custom_call.1']
    #allocation5 [shape = 'u8[262144]{0}', space=vmem, size = 0x40000, scoped, tag = 'output window, operand 0']
    %7 = vsyncpa [#allocation3], 0
    %s8 = scalar_lea.sflag [#allocation3], 1
    %9 = vsyncpa %s8, 0
    %10 = vsyncpa [#allocation4], 0
    %s11 = scalar_lea.sflag [#allocation4], 1
    %12 = vsyncpa %s11, 0
    loop: start=0, step=1, limit=6
    $region2: #{tpu_custom_call.1} parent=1 // loop_pre_header
      _
    $region3: #{tpu_custom_call.1} parent=1 // loop_header
      %s14 = sphi 0, %s18
      %p15 = scmp.ge.s32.totalorder %s14, 6
      %s24 = sphi 0, %s26
      %s27 = sphi 0, %s24
      %s28 = sphi 0, %s27
      %s44 = sphi 0, %s28
      %s50 = sphi 0, %s52
      %s53 = sphi 0, %s50
      %s54 = sphi 0, %s53
      %s70 = sphi 0, %s54
      %s76 = sphi 0, %s78
      %s79 = sphi 0, %s76
      %s80 = sphi 0, %s79
      %s96 = sphi 0, %s80
    $region4: #{tpu_custom_call.1} parent=1 // loop_header_branch
      %17 = sbr.rel (%p15) target = $region8
    $region5: #{tpu_custom_call.1} parent=1 // loop_body
      %s19 = ssub.s32 %s14, 1
      %s20 = ssub.s32 %s14, 2
      %s21 = sadd.s32 %s14, 1
      %s22 = ssub.s32 %s14, %s21
      %p23 = scmp.eq.s32.totalorder %s22, 0
      %s25 = sadd.s32 %s24, 1
      %s26 = scalar_select %p23, %s24, %s25
      %p29 = pneg %p23
      %p30 = scmp.eq.s32.totalorder %s14, 3
      %p31 = por %p29, %p30
      %p32 = scmp.ne.s32.totalorder %s24, %s27
      %p33 = scmp.eq.s32.totalorder %s14, 0
      %p34 = por %p32, %p33
      %p35 = scmp.ne.s32.totalorder %s24, %s27
      %p36 = scmp.eq.s32.totalorder %s19, 3
      %p37 = por %p35, %p36
      %p38 = scmp.ne.s32.totalorder %s27, %s28
      %p39 = scmp.eq.s32.totalorder %s19, 0
      %p40 = por %p38, %p39
      %p41 = scmp.ne.s32.totalorder %s27, %s28
      %p42 = scmp.eq.s32.totalorder %s20, 3
      %p43 = por %p41, %p42
      %p45 = scmp.ne.s32.totalorder %s28, %s44
      %p46 = scmp.eq.s32.totalorder %s20, 0
      %p47 = por %p45, %p46
      %s48 = ssub.s32 %s14, %s21
      %p49 = scmp.eq.s32.totalorder %s48, 0
      %s51 = sadd.s32 %s50, 1
      %s52 = scalar_select %p49, %s50, %s51
      %p55 = pneg %p49
      %p56 = scmp.eq.s32.totalorder %s14, 3
      %p57 = por %p55, %p56
      %p58 = scmp.ne.s32.totalorder %s50, %s53
      %p59 = scmp.eq.s32.totalorder %s14, 0
      %p60 = por %p58, %p59
      %p61 = scmp.ne.s32.totalorder %s50, %s53
      %p62 = scmp.eq.s32.totalorder %s19, 3
      %p63 = por %p61, %p62
      %p64 = scmp.ne.s32.totalorder %s53, %s54
      %p65 = scmp.eq.s32.totalorder %s19, 0
      %p66 = por %p64, %p65
      %p67 = scmp.ne.s32.totalorder %s53, %s54
      %p68 = scmp.eq.s32.totalorder %s20, 3
      %p69 = por %p67, %p68
      %p71 = scmp.ne.s32.totalorder %s54, %s70
      %p72 = scmp.eq.s32.totalorder %s20, 0
      %p73 = por %p71, %p72
      %s74 = ssub.s32 %s14, %s21
      %p75 = scmp.eq.s32.totalorder %s74, 0
      %s77 = sadd.s32 %s76, 1
      %s78 = scalar_select %p75, %s76, %s77
      %p81 = pneg %p75
      %p82 = scmp.eq.s32.totalorder %s14, 3
      %p83 = por %p81, %p82
      %p84 = scmp.ne.s32.totalorder %s76, %s79
      %p85 = scmp.eq.s32.totalorder %s14, 0
      %p86 = por %p84, %p85
      %p87 = scmp.ne.s32.totalorder %s76, %s79
      %p88 = scmp.eq.s32.totalorder %s19, 3
      %p89 = por %p87, %p88
      %p90 = scmp.ne.s32.totalorder %s79, %s80
      %p91 = scmp.eq.s32.totalorder %s19, 0
      %p92 = por %p90, %p91
      %p93 = scmp.ne.s32.totalorder %s79, %s80
      %p94 = scmp.eq.s32.totalorder %s20, 3
      %p95 = por %p93, %p94
      %p97 = scmp.ne.s32.totalorder %s80, %s96
      %p98 = scmp.eq.s32.totalorder %s20, 0
      %p99 = por %p97, %p98
      %p100 = scmp.le.s32.totalorder 1, %s14
      %p101 = scmp.lt.s32.totalorder %s14, 5
      %p102 = pnand %p100, %p101
      %p103 = pneg %p102
      // Predicated region
      $region9: #{tpu_custom_call.1} parent=5 // pred_check
        _
      $region10: #{tpu_custom_call.1} parent=5 // pred_check_branch
        %105 = sbr.rel (%p102) target = $region12
      $region11: #{tpu_custom_call.1} parent=5 // pred_region
        %s106 = ssub.s32 %s14, 1
      $region12: #{tpu_custom_call.1} parent=5 // pred_fallthru
        _
      %p107 = scmp.lt.s32.totalorder %s14, 4
      // Predicated region
      $region13: #{tpu_custom_call.1} parent=5 // pred_check
        %p108 = pneg %p107
      $region14: #{tpu_custom_call.1} parent=5 // pred_check_branch
        %110 = sbr.rel (%p108) target = $region16
      $region15: #{tpu_custom_call.1} parent=5 // pred_region
        // Predicated region
        $region17: #{tpu_custom_call.1} parent=15 // pred_check
          %p111 = pneg %p34
        $region18: #{tpu_custom_call.1} parent=15 // pred_check_branch
          %113 = sbr.rel (%p111) target = $region20
        $region19: #{tpu_custom_call.1} parent=15 // pred_region
          %s114 = sand.u32 %s24, 1
          %s115 = scalar_lea.sflag [#allocation3], %s114
          %s116 = sand.u32 %s24, 1
          %s117 = smul.addr %s116, 256
          %s118 = scalar_lea.vmem [#allocation2], %s117
          %s119 = smul.u32 32, %s14
          %s121 = ssub.s32 4096, 4096
          %122 = vsyncadd %s115, %s121
          %s123 = smul.addr %s119, 128
          %s124 = scalar_lea.hbm %s0, %s123
          %s125 = sshll.u32 %s118, 4
          %s126 = int_to_ptr.vmem [resolvable:$true] %s125
          %131 = dma.hbm_to_vmem [thread:$0]  %s124, 4096, %s126, %s115, 128, 128, 8
        $region20: #{tpu_custom_call.1} parent=15 // pred_fallthru
          _
        // Predicated region
        $region21: #{tpu_custom_call.1} parent=15 // pred_check
          %p132 = pneg %p60
        $region22: #{tpu_custom_call.1} parent=15 // pred_check_branch
          %134 = sbr.rel (%p132) target = $region24
        $region23: #{tpu_custom_call.1} parent=15 // pred_region
          %s135 = smul.u32 4, %s14
          %p136 = scmp.lt.s32.totalorder %s135, 31
          %s137 = scalar_select %p136, %s135, 31
          %s138 = smul.addr %s137, 8
          %s139 = scalar_lea.vmem %s1, %s138
          %s140 = smul.u32 4, %s14
        $region24: #{tpu_custom_call.1} parent=15 // pred_fallthru
          _
      $region16: #{tpu_custom_call.1} parent=5 // pred_fallthru
        _
      %p141 = scmp.le.s32.totalorder 1, %s14
      %p142 = scmp.lt.s32.totalorder %s14, 5
      %p143 = pnand %p141, %p142
      %p144 = pneg %p143
      // Predicated region
      $region25: #{tpu_custom_call.1} parent=5 // pred_check
        _
      $region26: #{tpu_custom_call.1} parent=5 // pred_check_branch
        %146 = sbr.rel (%p143) target = $region28
      $region27: #{tpu_custom_call.1} parent=5 // pred_region
        %s147 = ssub.s32 %s14, 1
        %s148 = sand.u32 %s27, 1
        %s149 = scalar_lea.sflag [#allocation3], %s148
        %s150 = sand.u32 %s27, 1
        %s151 = smul.addr %s150, 256
        %s152 = scalar_lea.vmem [#allocation2], %s151
        // Predicated region
        $region29: #{tpu_custom_call.1} parent=27 // pred_check
          %p153 = pneg %p40
        $region30: #{tpu_custom_call.1} parent=27 // pred_check_branch
          %155 = sbr.rel (%p153) target = $region32
        $region31: #{tpu_custom_call.1} parent=27 // pred_region
          %156 = dma.done %s149, 4096
        $region32: #{tpu_custom_call.1} parent=27 // pred_fallthru
          _
        %s157 = sand.u32 %s27, 1
        %s158 = scalar_lea.sflag [#allocation3], %s157
        %s159 = sand.u32 %s27, 1
        %s160 = smul.addr %s159, 256
        %s161 = scalar_lea.vmem [#allocation2], %s160
        %p162 = pneg %p40
        %p163 = pneg %p37
        %s164 = smul.u32 4, %s19
        %p165 = scmp.lt.s32.totalorder %s164, 31
        %s166 = scalar_select %p165, %s164, 31
        %s167 = smul.addr %s166, 8
        %s168 = scalar_lea.vmem %s1, %s167
        %p169 = pneg %p66
        %p170 = pneg %p63
        %p171 = pneg %p92
        %p172 = pneg %p89
        %s173 = sand.u32 %s79, 1
        %s174 = scalar_lea.sflag [#allocation4], %s173
        %s175 = sand.u32 %s79, 1
        %s176 = smul.addr %s175, 256
        %s177 = scalar_lea.vmem [#allocation5], %s176
        %s178 = smul.u32 32, %s19
        %s179 = smul.u32 4, %s19
        %p180 = scmp.lt.s32.totalorder %s179, 31
        %s181 = scalar_select %p180, %s179, 31
        %s182 = smul.addr %s181, 8
        %s183 = scalar_lea.vmem %s1, %s182
        %s184 = smul.u32 4, %s19
        %s185 = smul.u32 32, %s19
        %v186 = vld [vmem:[%s152] sm:$0xff]
        %v187 = vld [vmem:[%s152 + $0x8] sm:$0xff]
        %v188 = vld [vmem:[%s152 + $0x10] sm:$0xff]
        %v189 = vld [vmem:[%s152 + $0x18] sm:$0xff]
        %v190 = vld [vmem:[%s152 + $0x20] sm:$0xff]
        %v191 = vld [vmem:[%s152 + $0x28] sm:$0xff]
        %v192 = vld [vmem:[%s152 + $0x30] sm:$0xff]
        %v193 = vld [vmem:[%s152 + $0x38] sm:$0xff]
        %v194 = vld [vmem:[%s152 + $0x40] sm:$0xff]
        %v195 = vld [vmem:[%s152 + $0x48] sm:$0xff]
        %v196 = vld [vmem:[%s152 + $0x50] sm:$0xff]
        %v197 = vld [vmem:[%s152 + $0x58] sm:$0xff]
        %v198 = vld [vmem:[%s152 + $0x60] sm:$0xff]
        %v199 = vld [vmem:[%s152 + $0x68] sm:$0xff]
        %v200 = vld [vmem:[%s152 + $0x70] sm:$0xff]
        %v201 = vld [vmem:[%s152 + $0x78] sm:$0xff]
        %v202 = vld [vmem:[%s152 + $0x80] sm:$0xff]
        %v203 = vld [vmem:[%s152 + $0x88] sm:$0xff]
        %v204 = vld [vmem:[%s152 + $0x90] sm:$0xff]
        %v205 = vld [vmem:[%s152 + $0x98] sm:$0xff]
        %v206 = vld [vmem:[%s152 + $0xa0] sm:$0xff]
        %v207 = vld [vmem:[%s152 + $0xa8] sm:$0xff]
        %v208 = vld [vmem:[%s152 + $0xb0] sm:$0xff]
        %v209 = vld [vmem:[%s152 + $0xb8] sm:$0xff]
        %v210 = vld [vmem:[%s152 + $0xc0] sm:$0xff]
        %v211 = vld [vmem:[%s152 + $0xc8] sm:$0xff]
        %v212 = vld [vmem:[%s152 + $0xd0] sm:$0xff]
        %v213 = vld [vmem:[%s152 + $0xd8] sm:$0xff]
        %v214 = vld [vmem:[%s152 + $0xe0] sm:$0xff]
        %v215 = vld [vmem:[%s152 + $0xe8] sm:$0xff]
        %v216 = vld [vmem:[%s152 + $0xf0] sm:$0xff]
        %v217 = vld [vmem:[%s152 + $0xf8] sm:$0xff]
        %v218 = vld [vmem:[%s183] sm:$0xff]
        %v219 = vld [vmem:[%s183 + $0x8] sm:$0xff]
        %v220 = vld [vmem:[%s183 + $0x10] sm:$0xff]
        %v221 = vld [vmem:[%s183 + $0x18] sm:$0xff]
        %v226 = vcombine.high %v218, %v218
        %v228 = vunpack.c.l.s4 1966171168
        %v229 = vunpack.c.0.s8 %v228
        %v230 = vlaneseq
        %v231 = vshrl.u32 %v230, 7
        %v232 = vsub.s32 %v229, %v231
        %v233 = vrot.slane %v218, %v232
        %v235 = vunpack.c.l.s4 1966171168
        %v236 = vunpack.c.0.s8 %v235
        %v237 = vlaneseq
        %v238 = vshrl.u32 %v237, 7
        %v239 = vsub.s32 %v236, %v238
        %v240 = vrot.slane %v226, %v239
        %v241 = vcombine.high %v233, %v233
        %v242 = vcombine.high %v240, %v240
        %v244 = vunpack.c.l.s4 1966171168
        %v245 = vunpack.c.0.s8 %v244
        %v246 = vlaneseq
        %v247 = vshrl.u32 %v246, 7
        %v248 = vsub.s32 %v245, %v247
        %v249 = vrot.slane %v233, %v248
        %v251 = vunpack.c.l.s4 1966171168
        %v252 = vunpack.c.0.s8 %v251
        %v253 = vlaneseq
        %v254 = vshrl.u32 %v253, 7
        %v255 = vsub.s32 %v252, %v254
        %v256 = vrot.slane %v240, %v255
        %v258 = vunpack.c.l.s4 1966171168
        %v259 = vunpack.c.0.s8 %v258
        %v260 = vlaneseq
        %v261 = vshrl.u32 %v260, 7
        %v262 = vsub.s32 %v259, %v261
        %v263 = vrot.slane %v241, %v262
        %v265 = vunpack.c.l.s4 1966171168
        %v266 = vunpack.c.0.s8 %v265
        %v267 = vlaneseq
        %v268 = vshrl.u32 %v267, 7
        %v269 = vsub.s32 %v266, %v268
        %v270 = vrot.slane %v242, %v269
        %v271 = vcombine.high %v249, %v249
        %v272 = vcombine.high %v256, %v256
        %v273 = vcombine.high %v263, %v263
        %v274 = vcombine.high %v270, %v270
        %v275 = vcombine.high %v219, %v219
        %v277 = vunpack.c.l.s4 1966171168
        %v278 = vunpack.c.0.s8 %v277
        %v279 = vlaneseq
        %v280 = vshrl.u32 %v279, 7
        %v281 = vsub.s32 %v278, %v280
        %v282 = vrot.slane %v219, %v281
        %v284 = vunpack.c.l.s4 1966171168
        %v285 = vunpack.c.0.s8 %v284
        %v286 = vlaneseq
        %v287 = vshrl.u32 %v286, 7
        %v288 = vsub.s32 %v285, %v287
        %v289 = vrot.slane %v275, %v288
        %v290 = vcombine.high %v282, %v282
        %v291 = vcombine.high %v289, %v289
        %v293 = vunpack.c.l.s4 1966171168
        %v294 = vunpack.c.0.s8 %v293
        %v295 = vlaneseq
        %v296 = vshrl.u32 %v295, 7
        %v297 = vsub.s32 %v294, %v296
        %v298 = vrot.slane %v282, %v297
        %v300 = vunpack.c.l.s4 1966171168
        %v301 = vunpack.c.0.s8 %v300
        %v302 = vlaneseq
        %v303 = vshrl.u32 %v302, 7
        %v304 = vsub.s32 %v301, %v303
        %v305 = vrot.slane %v289, %v304
        %v307 = vunpack.c.l.s4 1966171168
        %v308 = vunpack.c.0.s8 %v307
        %v309 = vlaneseq
        %v310 = vshrl.u32 %v309, 7
        %v311 = vsub.s32 %v308, %v310
        %v312 = vrot.slane %v290, %v311
        %v314 = vunpack.c.l.s4 1966171168
        %v315 = vunpack.c.0.s8 %v314
        %v316 = vlaneseq
        %v317 = vshrl.u32 %v316, 7
        %v318 = vsub.s32 %v315, %v317
        %v319 = vrot.slane %v291, %v318
        %v320 = vcombine.high %v298, %v298
        %v321 = vcombine.high %v305, %v305
        %v322 = vcombine.high %v312, %v312
        %v323 = vcombine.high %v319, %v319
        %v324 = vcombine.high %v220, %v220
        %v326 = vunpack.c.l.s4 1966171168
        %v327 = vunpack.c.0.s8 %v326
        %v328 = vlaneseq
        %v329 = vshrl.u32 %v328, 7
        %v330 = vsub.s32 %v327, %v329
        %v331 = vrot.slane %v220, %v330
        %v333 = vunpack.c.l.s4 1966171168
        %v334 = vunpack.c.0.s8 %v333
        %v335 = vlaneseq
        %v336 = vshrl.u32 %v335, 7
        %v337 = vsub.s32 %v334, %v336
        %v338 = vrot.slane %v324, %v337
        %v339 = vcombine.high %v331, %v331
        %v340 = vcombine.high %v338, %v338
        %v342 = vunpack.c.l.s4 1966171168
        %v343 = vunpack.c.0.s8 %v342
        %v344 = vlaneseq
        %v345 = vshrl.u32 %v344, 7
        %v346 = vsub.s32 %v343, %v345
        %v347 = vrot.slane %v331, %v346
        %v349 = vunpack.c.l.s4 1966171168
        %v350 = vunpack.c.0.s8 %v349
        %v351 = vlaneseq
        %v352 = vshrl.u32 %v351, 7
        %v353 = vsub.s32 %v350, %v352
        %v354 = vrot.slane %v338, %v353
        %v356 = vunpack.c.l.s4 1966171168
        %v357 = vunpack.c.0.s8 %v356
        %v358 = vlaneseq
        %v359 = vshrl.u32 %v358, 7
        %v360 = vsub.s32 %v357, %v359
        %v361 = vrot.slane %v339, %v360
        %v363 = vunpack.c.l.s4 1966171168
        %v364 = vunpack.c.0.s8 %v363
        %v365 = vlaneseq
        %v366 = vshrl.u32 %v365, 7
        %v367 = vsub.s32 %v364, %v366
        %v368 = vrot.slane %v340, %v367
        %v369 = vcombine.high %v347, %v347
        %v370 = vcombine.high %v354, %v354
        %v371 = vcombine.high %v361, %v361
        %v372 = vcombine.high %v368, %v368
        %v373 = vcombine.high %v221, %v221
        %v375 = vunpack.c.l.s4 1966171168
        %v376 = vunpack.c.0.s8 %v375
        %v377 = vlaneseq
        %v378 = vshrl.u32 %v377, 7
        %v379 = vsub.s32 %v376, %v378
        %v380 = vrot.slane %v221, %v379
        %v382 = vunpack.c.l.s4 1966171168
        %v383 = vunpack.c.0.s8 %v382
        %v384 = vlaneseq
        %v385 = vshrl.u32 %v384, 7
        %v386 = vsub.s32 %v383, %v385
        %v387 = vrot.slane %v373, %v386
        %v388 = vcombine.high %v380, %v380
        %v389 = vcombine.high %v387, %v387
        %v391 = vunpack.c.l.s4 1966171168
        %v392 = vunpack.c.0.s8 %v391
        %v393 = vlaneseq
        %v394 = vshrl.u32 %v393, 7
        %v395 = vsub.s32 %v392, %v394
        %v396 = vrot.slane %v380, %v395
        %v398 = vunpack.c.l.s4 1966171168
        %v399 = vunpack.c.0.s8 %v398
        %v400 = vlaneseq
        %v401 = vshrl.u32 %v400, 7
        %v402 = vsub.s32 %v399, %v401
        %v403 = vrot.slane %v387, %v402
        %v405 = vunpack.c.l.s4 1966171168
        %v406 = vunpack.c.0.s8 %v405
        %v407 = vlaneseq
        %v408 = vshrl.u32 %v407, 7
        %v409 = vsub.s32 %v406, %v408
        %v410 = vrot.slane %v388, %v409
        %v412 = vunpack.c.l.s4 1966171168
        %v413 = vunpack.c.0.s8 %v412
        %v414 = vlaneseq
        %v415 = vshrl.u32 %v414, 7
        %v416 = vsub.s32 %v413, %v415
        %v417 = vrot.slane %v389, %v416
        %v418 = vcombine.high %v396, %v396
        %v419 = vcombine.high %v403, %v403
        %v420 = vcombine.high %v410, %v410
        %v421 = vcombine.high %v417, %v417
        %v422 = vlaneseq
        %v423 = vshrl.u32 %v422, 7
        %v424 = vsub.s32 0, %v423
        %v425 = vrot.slane %v249, %v424
        %v426 = vlaneseq
        %v427 = vshrl.u32 %v426, 7
        %v428 = vsub.s32 0, %v427
        %v429 = vrot.slane %v263, %v428
        %v430 = vlaneseq
        %v431 = vshrl.u32 %v430, 7
        %v432 = vsub.s32 0, %v431
        %v433 = vrot.slane %v271, %v432
        %v434 = vlaneseq
        %v435 = vshrl.u32 %v434, 7
        %v436 = vsub.s32 0, %v435
        %v437 = vrot.slane %v273, %v436
        %v438 = vlaneseq
        %v439 = vshrl.u32 %v438, 7
        %v440 = vsub.s32 0, %v439
        %v441 = vrot.slane %v256, %v440
        %v442 = vlaneseq
        %v443 = vshrl.u32 %v442, 7
        %v444 = vsub.s32 0, %v443
        %v445 = vrot.slane %v270, %v444
        %v446 = vlaneseq
        %v447 = vshrl.u32 %v446, 7
        %v448 = vsub.s32 0, %v447
        %v449 = vrot.slane %v272, %v448
        %v450 = vlaneseq
        %v451 = vshrl.u32 %v450, 7
        %v452 = vsub.s32 0, %v451
        %v453 = vrot.slane %v274, %v452
        %v454 = vlaneseq
        %v455 = vshrl.u32 %v454, 7
        %v456 = vsub.s32 0, %v455
        %v457 = vrot.slane %v298, %v456
        %v458 = vlaneseq
        %v459 = vshrl.u32 %v458, 7
        %v460 = vsub.s32 0, %v459
        %v461 = vrot.slane %v312, %v460
        %v462 = vlaneseq
        %v463 = vshrl.u32 %v462, 7
        %v464 = vsub.s32 0, %v463
        %v465 = vrot.slane %v320, %v464
        %v466 = vlaneseq
        %v467 = vshrl.u32 %v466, 7
        %v468 = vsub.s32 0, %v467
        %v469 = vrot.slane %v322, %v468
        %v470 = vlaneseq
        %v471 = vshrl.u32 %v470, 7
        %v472 = vsub.s32 0, %v471
        %v473 = vrot.slane %v305, %v472
        %v474 = vlaneseq
        %v475 = vshrl.u32 %v474, 7
        %v476 = vsub.s32 0, %v475
        %v477 = vrot.slane %v319, %v476
        %v478 = vlaneseq
        %v479 = vshrl.u32 %v478, 7
        %v480 = vsub.s32 0, %v479
        %v481 = vrot.slane %v321, %v480
        %v482 = vlaneseq
        %v483 = vshrl.u32 %v482, 7
        %v484 = vsub.s32 0, %v483
        %v485 = vrot.slane %v323, %v484
        %v486 = vlaneseq
        %v487 = vshrl.u32 %v486, 7
        %v488 = vsub.s32 0, %v487
        %v489 = vrot.slane %v347, %v488
        %v490 = vlaneseq
        %v491 = vshrl.u32 %v490, 7
        %v492 = vsub.s32 0, %v491
        %v493 = vrot.slane %v361, %v492
        %v494 = vlaneseq
        %v495 = vshrl.u32 %v494, 7
        %v496 = vsub.s32 0, %v495
        %v497 = vrot.slane %v369, %v496
        %v498 = vlaneseq
        %v499 = vshrl.u32 %v498, 7
        %v500 = vsub.s32 0, %v499
        %v501 = vrot.slane %v371, %v500
        %v502 = vlaneseq
        %v503 = vshrl.u32 %v502, 7
        %v504 = vsub.s32 0, %v503
        %v505 = vrot.slane %v354, %v504
        %v506 = vlaneseq
        %v507 = vshrl.u32 %v506, 7
        %v508 = vsub.s32 0, %v507
        %v509 = vrot.slane %v368, %v508
        %v510 = vlaneseq
        %v511 = vshrl.u32 %v510, 7
        %v512 = vsub.s32 0, %v511
        %v513 = vrot.slane %v370, %v512
        %v514 = vlaneseq
        %v515 = vshrl.u32 %v514, 7
        %v516 = vsub.s32 0, %v515
        %v517 = vrot.slane %v372, %v516
        %v518 = vlaneseq
        %v519 = vshrl.u32 %v518, 7
        %v520 = vsub.s32 0, %v519
        %v521 = vrot.slane %v396, %v520
        %v522 = vlaneseq
        %v523 = vshrl.u32 %v522, 7
        %v524 = vsub.s32 0, %v523
        %v525 = vrot.slane %v410, %v524
        %v526 = vlaneseq
        %v527 = vshrl.u32 %v526, 7
        %v528 = vsub.s32 0, %v527
        %v529 = vrot.slane %v418, %v528
        %v530 = vlaneseq
        %v531 = vshrl.u32 %v530, 7
        %v532 = vsub.s32 0, %v531
        %v533 = vrot.slane %v420, %v532
        %v534 = vlaneseq
        %v535 = vshrl.u32 %v534, 7
        %v536 = vsub.s32 0, %v535
        %v537 = vrot.slane %v403, %v536
        %v538 = vlaneseq
        %v539 = vshrl.u32 %v538, 7
        %v540 = vsub.s32 0, %v539
        %v541 = vrot.slane %v417, %v540
        %v542 = vlaneseq
        %v543 = vshrl.u32 %v542, 7
        %v544 = vsub.s32 0, %v543
        %v545 = vrot.slane %v419, %v544
        %v546 = vlaneseq
        %v547 = vshrl.u32 %v546, 7
        %v548 = vsub.s32 0, %v547
        %v549 = vrot.slane %v421, %v548
        %v582 = vadd.f32 %v186, %v425
        %v583 = vadd.f32 %v187, %v429
        %v584 = vadd.f32 %v188, %v433
        %v585 = vadd.f32 %v189, %v437
        %v586 = vadd.f32 %v190, %v441
        %v587 = vadd.f32 %v191, %v445
        %v588 = vadd.f32 %v192, %v449
        %v589 = vadd.f32 %v193, %v453
        %v590 = vadd.f32 %v194, %v457
        %v591 = vadd.f32 %v195, %v461
        %v592 = vadd.f32 %v196, %v465
        %v593 = vadd.f32 %v197, %v469
        %v594 = vadd.f32 %v198, %v473
        %v595 = vadd.f32 %v199, %v477
        %v596 = vadd.f32 %v200, %v481
        %v597 = vadd.f32 %v201, %v485
        %v598 = vadd.f32 %v202, %v489
        %v599 = vadd.f32 %v203, %v493
        %v600 = vadd.f32 %v204, %v497
        %v601 = vadd.f32 %v205, %v501
        %v602 = vadd.f32 %v206, %v505
        %v603 = vadd.f32 %v207, %v509
        %v604 = vadd.f32 %v208, %v513
        %v605 = vadd.f32 %v209, %v517
        %v606 = vadd.f32 %v210, %v521
        %v607 = vadd.f32 %v211, %v525
        %v608 = vadd.f32 %v212, %v529
        %v609 = vadd.f32 %v213, %v533
        %v610 = vadd.f32 %v214, %v537
        %v611 = vadd.f32 %v215, %v541
        %v612 = vadd.f32 %v216, %v545
        %v613 = vadd.f32 %v217, %v549
        %614 = vst [vmem:[%s177] sm:$0xff] %v582
        %615 = vst [vmem:[%s177 + $0x8] sm:$0xff] %v583
        %616 = vst [vmem:[%s177 + $0x10] sm:$0xff] %v584
        %617 = vst [vmem:[%s177 + $0x18] sm:$0xff] %v585
        %618 = vst [vmem:[%s177 + $0x20] sm:$0xff] %v586
        %619 = vst [vmem:[%s177 + $0x28] sm:$0xff] %v587
        %620 = vst [vmem:[%s177 + $0x30] sm:$0xff] %v588
        %621 = vst [vmem:[%s177 + $0x38] sm:$0xff] %v589
        %622 = vst [vmem:[%s177 + $0x40] sm:$0xff] %v590
        %623 = vst [vmem:[%s177 + $0x48] sm:$0xff] %v591
        %624 = vst [vmem:[%s177 + $0x50] sm:$0xff] %v592
        %625 = vst [vmem:[%s177 + $0x58] sm:$0xff] %v593
        %626 = vst [vmem:[%s177 + $0x60] sm:$0xff] %v594
        %627 = vst [vmem:[%s177 + $0x68] sm:$0xff] %v595
        %628 = vst [vmem:[%s177 + $0x70] sm:$0xff] %v596
        %629 = vst [vmem:[%s177 + $0x78] sm:$0xff] %v597
        %630 = vst [vmem:[%s177 + $0x80] sm:$0xff] %v598
        %631 = vst [vmem:[%s177 + $0x88] sm:$0xff] %v599
        %632 = vst [vmem:[%s177 + $0x90] sm:$0xff] %v600
        %633 = vst [vmem:[%s177 + $0x98] sm:$0xff] %v601
        %634 = vst [vmem:[%s177 + $0xa0] sm:$0xff] %v602
        %635 = vst [vmem:[%s177 + $0xa8] sm:$0xff] %v603
        %636 = vst [vmem:[%s177 + $0xb0] sm:$0xff] %v604
        %637 = vst [vmem:[%s177 + $0xb8] sm:$0xff] %v605
        %638 = vst [vmem:[%s177 + $0xc0] sm:$0xff] %v606
        %639 = vst [vmem:[%s177 + $0xc8] sm:$0xff] %v607
        %640 = vst [vmem:[%s177 + $0xd0] sm:$0xff] %v608
        %641 = vst [vmem:[%s177 + $0xd8] sm:$0xff] %v609
        %642 = vst [vmem:[%s177 + $0xe0] sm:$0xff] %v610
        %643 = vst [vmem:[%s177 + $0xe8] sm:$0xff] %v611
        %644 = vst [vmem:[%s177 + $0xf0] sm:$0xff] %v612
        %645 = vst [vmem:[%s177 + $0xf8] sm:$0xff] %v613
        %s646 = sand.u32 %s79, 1
        %s647 = scalar_lea.sflag [#allocation4], %s646
        %s648 = sand.u32 %s79, 1
        %s649 = smul.addr %s648, 256
        %s650 = scalar_lea.vmem [#allocation5], %s649
        // Predicated region
        $region33: #{tpu_custom_call.1} parent=27 // pred_check
          %p651 = pneg %p89
        $region34: #{tpu_custom_call.1} parent=27 // pred_check_branch
          %653 = sbr.rel (%p651) target = $region36
        $region35: #{tpu_custom_call.1} parent=27 // pred_region
          %s654 = smul.u32 32, %s19
          %s656 = ssub.s32 4096, 4096
          %657 = vsyncadd %s647, %s656
          %s658 = smul.addr %s654, 128
          %s659 = scalar_lea.hbm %s2, %s658
          %s660 = sshll.u32 %s650, 4
          %s661 = int_to_ptr.vmem [resolvable:$true] %s660
          %666 = dma.vmem_to_hbm [thread:$0]  %s661, 4096, %s659, %s647, 128, 128, 8
        $region36: #{tpu_custom_call.1} parent=27 // pred_fallthru
          _
      $region28: #{tpu_custom_call.1} parent=5 // pred_fallthru
        _
      %p667 = scmp.le.s32.totalorder 2, %s14
      // Predicated region
      $region37: #{tpu_custom_call.1} parent=5 // pred_check
        %p668 = pneg %p667
      $region38: #{tpu_custom_call.1} parent=5 // pred_check_branch
        %670 = sbr.rel (%p668) target = $region40
      $region39: #{tpu_custom_call.1} parent=5 // pred_region
        %s671 = ssub.s32 %s14, 2
        // Predicated region
        $region41: #{tpu_custom_call.1} parent=39 // pred_check
          %p672 = pneg %p95
        $region42: #{tpu_custom_call.1} parent=39 // pred_check_branch
          %674 = sbr.rel (%p672) target = $region44
        $region43: #{tpu_custom_call.1} parent=39 // pred_region
          %s675 = sand.u32 %s80, 1
          %s676 = scalar_lea.sflag [#allocation4], %s675
          %s677 = sand.u32 %s80, 1
          %s678 = smul.addr %s677, 256
          %s679 = scalar_lea.vmem [#allocation5], %s678
          %680 = dma.done %s676, 4096
        $region44: #{tpu_custom_call.1} parent=39 // pred_fallthru
          _
      $region40: #{tpu_custom_call.1} parent=5 // pred_fallthru
        _
    $region6: #{tpu_custom_call.1} parent=1 // loop_footer
      %s18 = sadd.s32 1, %s14
    $region7: #{tpu_custom_call.1} parent=1 // loop_footer_branch
      %13 = sbr.rel target = $region3
    $region8: #{tpu_custom_call.1} parent=1 // loop_exit
      _
    %681 = vsyncpa [#allocation3], 1
    %s682 = scalar_lea.sflag [#allocation3], 1
    %683 = vsyncpa %s682, 1
    %684 = vsyncpa [#allocation4], 1
    %s685 = scalar_lea.sflag [#allocation4], 1
    %686 = vsyncpa %s685, 1

</llo_original>
